<compile_context>
chip_gen: v5e
topology: v5e:2x2
jax: 0.10.0
libtpu: 0.0.40
codegen_flags: <defaults>
</compile_context>

<pallas_src>
import functools

import jax
import jax.numpy as jnp
from jax.experimental import pallas as pl
from jax.experimental.pallas import tpu as pltpu  # noqa: F401  (TPU backend)

LANE = 128


def _round_up(n, m):
    return ((n + m - 1) // m) * m


def _pad_to(a, shape):
    return jnp.pad(a, [(0, s - d) for d, s in zip(a.shape, shape)])


# ----------------------------- fused Pallas kernel ---------------------------

def fused_gcn_res_kernel(a_ref, x_ref, w0_ref, b0_ref, wp_ref, bp_ref,
                         wm_ref, bm_ref, wl_ref, bl_ref, o_ref, *, num_mid):
    f32 = jnp.float32
    bf16 = jnp.bfloat16

    a = a_ref[...]                      # [N, N]  bf16, resident for all layers
    x = x_ref[...]                      # [N, Fp] bf16

    # ---- first GCN layer: (A @ X) @ W0  (F_in < hidden => cheaper order) ----
    ax = jnp.dot(a, x, preferred_element_type=f32)                      # [N, Fp]
    h = jnp.dot(ax.astype(bf16), w0_ref[...], preferred_element_type=f32)
    h = jnp.maximum(h + b0_ref[...], 0.0)                               # relu, f32

    # ---- input projection (Linear) residual ----
    proj = jnp.dot(x, wp_ref[...], preferred_element_type=f32) + bp_ref[...]
    h = h + proj                                                        # f32 [N, Hp]
    # dropout(p=0.0) is a no-op

    # ---- middle GCN layers (static unroll): relu(A @ (H @ Wi) + bi) + H ----
    for i in range(num_mid):
        xw = jnp.dot(h.astype(bf16), wm_ref[i], preferred_element_type=f32)
        agg = jnp.dot(a, xw.astype(bf16), preferred_element_type=f32)
        h = jnp.maximum(agg + bm_ref[i], 0.0) + h

    # ---- last GCN layer: A @ (H @ WL)  (num_classes < hidden); no relu/res ----
    xw = jnp.dot(h.astype(bf16), wl_ref[...], preferred_element_type=f32)
    out = jnp.dot(a, xw.astype(bf16), preferred_element_type=f32) + bl_ref[...]
    o_ref[...] = out.astype(o_ref.dtype)                                # lane-dense store


# ------------------------------ call wrapper ---------------------------------

def _full_spec(shape):
    nd = len(shape)
    return pl.BlockSpec(shape, lambda *_: (0,) * nd)


def simple_gcn_res_forward(x, a_norm, params):
    """params = ((W0, b0), (Wp, bp), [(Wi, bi), ...], (WL, bL)); returns [N, C] f32."""
    (w0, b0), (wp, bp), mids, (wl, bl) = params
    n, f_in = x.shape
    hidden = w0.shape[1]
    n_classes = wl.shape[1]

    fp = _round_up(f_in, LANE)
    hp = _round_up(hidden, LANE)
    cp = _round_up(n_classes, LANE)

    # Lane-dense bf16 MXU operands; biases stay f32 for the f32 epilogue math.
    a_p = a_norm.astype(jnp.bfloat16)
    x_p = _pad_to(x, (n, fp)).astype(jnp.bfloat16)
    w0_p = _pad_to(w0, (fp, hp)).astype(jnp.bfloat16)
    b0_p = _pad_to(b0.reshape(1, -1), (1, hp)).astype(jnp.float32)
    wp_p = _pad_to(wp, (fp, hp)).astype(jnp.bfloat16)
    bp_p = _pad_to(bp.reshape(1, -1), (1, hp)).astype(jnp.float32)

    num_mid = len(mids)
    if num_mid > 0:
        wm = jnp.stack([_pad_to(w, (hp, hp)) for (w, _) in mids]).astype(jnp.bfloat16)
        bm = jnp.stack([_pad_to(b.reshape(1, -1), (1, hp)) for (_, b) in mids]).astype(jnp.float32)
    else:  # dummy, never read (static loop has zero iterations)
        wm = jnp.zeros((1, hp, hp), jnp.bfloat16)
        bm = jnp.zeros((1, 1, hp), jnp.float32)

    wl_p = _pad_to(wl, (hp, cp)).astype(jnp.bfloat16)
    bl_p = _pad_to(bl.reshape(1, -1), (1, cp)).astype(jnp.float32)

    arrays = (a_p, x_p, w0_p, b0_p, wp_p, bp_p, wm, bm, wl_p, bl_p)

    # Advisory cost estimate for the fused call.
    flops = (2 * n * n * fp + 2 * n * fp * hp            # first conv ((A@X)@W0)
             + 2 * n * fp * hp                            # input_proj
             + num_mid * (2 * n * hp * hp + 2 * n * n * hp)
             + 2 * n * hp * cp + 2 * n * n * cp)          # last conv
    bytes_accessed = (sum(int(arr.size) * arr.dtype.itemsize for arr in arrays)
                      + n * cp * 4)

    out_padded = pl.pallas_call(
        functools.partial(fused_gcn_res_kernel, num_mid=num_mid),
        out_shape=jax.ShapeDtypeStruct((n, cp), jnp.float32),
        in_specs=[_full_spec(arr.shape) for arr in arrays],
        out_specs=_full_spec((n, cp)),
        cost_estimate=pl.CostEstimate(flops=flops, transcendentals=0,
                                      bytes_accessed=bytes_accessed),
    )(*arrays)

    return out_padded[:, :n_classes]


# ------------------------------ graph glue ------------------------------------

def build_norm_adj(edge_index, num_nodes):
    """GCN normalization: add self loops, A_norm = D^-1/2 (A + I) D^-1/2.

    edge_index: int array [2, E], row 0 = source, row 1 = target (PyG convention).
    Dense A[dst, src] = 1 so (A @ X)[i] aggregates messages flowing into node i.
    """
    src, dst = edge_index[0], edge_index[1]
    a = jnp.zeros((num_nodes, num_nodes), jnp.float32)
    a = a.at[dst, src].set(1.0)
    a = a + jnp.eye(num_nodes, dtype=jnp.float32)        # self loops
    deg = a.sum(axis=1)
    d_inv_sqrt = jnp.where(deg > 0, 1.0 / jnp.sqrt(deg), 0.0)
    return d_inv_sqrt[:, None] * a * d_inv_sqrt[None, :]


# --------------------------------- main ----------------------------------------

if __name__ == "__main__":
    # Shapes implied by the module's forward: x [N, num_features], edge_index [2, E].
    N = 8
    num_features = 4
    hidden = 32
    num_classes = 4
    num_layers = 3           # -> first conv, 1 middle conv, last conv

    key = jax.random.PRNGKey(0)
    kx, k0, kp, kbp, k1, k2 = jax.random.split(key, 6)

    def glorot(k, shape):
        fan_in, fan_out = shape
        lim = jnp.sqrt(6.0 / (fan_in + fan_out))
        return jax.random.uniform(k, shape, jnp.float32, -lim, lim)

    # Deterministic synthetic parameters (GCNConv biases start at zero like PyG).
    w0 = glorot(k0, (num_features, hidden))
    b0 = jnp.zeros((1, hidden), jnp.float32)
    wp = glorot(kp, (num_features, hidden))              # input_proj (Linear) weight
    bp = 0.1 * jax.random.normal(kbp, (1, hidden), jnp.float32)
    w1 = glorot(k1, (hidden, hidden))
    b1 = jnp.zeros((1, hidden), jnp.float32)
    wl = glorot(k2, (hidden, num_classes))
    bl = jnp.zeros((1, num_classes), jnp.float32)

    params = ((w0, b0), (wp, bp), [(w1, b1)], (wl, bl))

    # Node features and a deterministic ring graph (bidirectional edges).
    x = jax.random.normal(kx, (N, num_features), jnp.float32)
    src = jnp.concatenate([jnp.arange(N), jnp.arange(N)])
    dst = jnp.concatenate([(jnp.arange(N) + 1) % N, (jnp.arange(N) - 1) % N])
    edge_index = jnp.stack([src, dst]).astype(jnp.int32)

    a_norm = build_norm_adj(edge_index, N)

    out = simple_gcn_res_forward(x, a_norm, params)
    out = jax.block_until_ready(out)
    assert out.shape == (N, num_classes)
    print("KERNEL_OK")
</pallas_src>

<mosaic_0001>
module attributes {stable_mosaic.version = 11 : i64} {
  func.func @fused_gcn_res_kernel(%arg0: memref<8x8xbf16, #tpu.memory_space<vmem>>, %arg1: memref<8x128xbf16, #tpu.memory_space<vmem>>, %arg2: memref<128x128xbf16, #tpu.memory_space<vmem>>, %arg3: memref<1x128xf32, #tpu.memory_space<vmem>>, %arg4: memref<128x128xbf16, #tpu.memory_space<vmem>>, %arg5: memref<1x128xf32, #tpu.memory_space<vmem>>, %arg6: memref<1x128x128xbf16, #tpu.memory_space<vmem>>, %arg7: memref<1x1x128xf32, #tpu.memory_space<vmem>>, %arg8: memref<128x128xbf16, #tpu.memory_space<vmem>>, %arg9: memref<1x128xf32, #tpu.memory_space<vmem>>, %arg10: memref<8x128xf32, #tpu.memory_space<vmem>>) attributes {dimension_semantics = [], scalar_prefetch = 0 : i64, scratch_operands = 0 : i64, tpu.core_type = #tpu.core_type<tc>} {
    %c0 = arith.constant 0 : index
    %c0_0 = arith.constant 0 : index
    %0 = vector.load %arg0[%c0, %c0_0] : memref<8x8xbf16, #tpu.memory_space<vmem>>, vector<8x8xbf16>
    %c0_1 = arith.constant 0 : index
    %c0_2 = arith.constant 0 : index
    %1 = vector.load %arg1[%c0_1, %c0_2] : memref<8x128xbf16, #tpu.memory_space<vmem>>, vector<8x128xbf16>
    %cst = arith.constant dense<0.000000e+00> : vector<8x128xf32>
    %2 = tpu.matmul %0, %1, %cst {dimension_numbers = #tpu.dot_dimension_numbers<[1], [0], [0], [1], [0, 0, 1, 1], [], []>} : vector<8x8xbf16>, vector<8x128xbf16>, vector<8x128xf32> -> vector<8x128xf32>
    %3 = arith.truncf %2 : vector<8x128xf32> to vector<8x128xbf16>
    %c0_3 = arith.constant 0 : index
    %c0_4 = arith.constant 0 : index
    %4 = vector.load %arg2[%c0_3, %c0_4] : memref<128x128xbf16, #tpu.memory_space<vmem>>, vector<128x128xbf16>
    %cst_5 = arith.constant dense<0.000000e+00> : vector<8x128xf32>
    %5 = tpu.matmul %3, %4, %cst_5 {dimension_numbers = #tpu.dot_dimension_numbers<[1], [0], [0], [1], [0, 0, 1, 1], [], []>} : vector<8x128xbf16>, vector<128x128xbf16>, vector<8x128xf32> -> vector<8x128xf32>
    %c0_6 = arith.constant 0 : index
    %c0_7 = arith.constant 0 : index
    %6 = vector.load %arg3[%c0_6, %c0_7] : memref<1x128xf32, #tpu.memory_space<vmem>>, vector<1x128xf32>
    %7 = vector.broadcast %6 : vector<1x128xf32> to vector<8x128xf32>
    %8 = arith.addf %5, %7 : vector<8x128xf32>
    %cst_8 = arith.constant 0.000000e+00 : f32
    %9 = vector.broadcast %cst_8 : f32 to vector<8x128xf32>
    %10 = arith.maximumf %8, %9 : vector<8x128xf32>
    %c0_9 = arith.constant 0 : index
    %c0_10 = arith.constant 0 : index
    %11 = vector.load %arg4[%c0_9, %c0_10] : memref<128x128xbf16, #tpu.memory_space<vmem>>, vector<128x128xbf16>
    %cst_11 = arith.constant dense<0.000000e+00> : vector<8x128xf32>
    %12 = tpu.matmul %1, %11, %cst_11 {dimension_numbers = #tpu.dot_dimension_numbers<[1], [0], [0], [1], [0, 0, 1, 1], [], []>} : vector<8x128xbf16>, vector<128x128xbf16>, vector<8x128xf32> -> vector<8x128xf32>
    %c0_12 = arith.constant 0 : index
    %c0_13 = arith.constant 0 : index
    %13 = vector.load %arg5[%c0_12, %c0_13] : memref<1x128xf32, #tpu.memory_space<vmem>>, vector<1x128xf32>
    %14 = vector.broadcast %13 : vector<1x128xf32> to vector<8x128xf32>
    %15 = arith.addf %12, %14 : vector<8x128xf32>
    %16 = arith.addf %10, %15 : vector<8x128xf32>
    %17 = arith.truncf %16 : vector<8x128xf32> to vector<8x128xbf16>
    %c0_14 = arith.constant 0 : index
    %c0_15 = arith.constant 0 : index
    %c0_16 = arith.constant 0 : index
    %18 = vector.load %arg6[%c0_14, %c0_15, %c0_16] : memref<1x128x128xbf16, #tpu.memory_space<vmem>>, vector<1x128x128xbf16>
    %19 = vector.shape_cast %18 : vector<1x128x128xbf16> to vector<128x128xbf16>
    %cst_17 = arith.constant dense<0.000000e+00> : vector<8x128xf32>
    %20 = tpu.matmul %17, %19, %cst_17 {dimension_numbers = #tpu.dot_dimension_numbers<[1], [0], [0], [1], [0, 0, 1, 1], [], []>} : vector<8x128xbf16>, vector<128x128xbf16>, vector<8x128xf32> -> vector<8x128xf32>
    %21 = arith.truncf %20 : vector<8x128xf32> to vector<8x128xbf16>
    %cst_18 = arith.constant dense<0.000000e+00> : vector<8x128xf32>
    %22 = tpu.matmul %0, %21, %cst_18 {dimension_numbers = #tpu.dot_dimension_numbers<[1], [0], [0], [1], [0, 0, 1, 1], [], []>} : vector<8x8xbf16>, vector<8x128xbf16>, vector<8x128xf32> -> vector<8x128xf32>
    %c0_19 = arith.constant 0 : index
    %c0_20 = arith.constant 0 : index
    %c0_21 = arith.constant 0 : index
    %23 = vector.load %arg7[%c0_19, %c0_20, %c0_21] : memref<1x1x128xf32, #tpu.memory_space<vmem>>, vector<1x1x128xf32>
    %24 = vector.shape_cast %23 : vector<1x1x128xf32> to vector<1x128xf32>
    %25 = vector.broadcast %24 : vector<1x128xf32> to vector<8x128xf32>
    %26 = arith.addf %22, %25 : vector<8x128xf32>
    %cst_22 = arith.constant 0.000000e+00 : f32
    %27 = vector.broadcast %cst_22 : f32 to vector<8x128xf32>
    %28 = arith.maximumf %26, %27 : vector<8x128xf32>
    %29 = arith.addf %28, %16 : vector<8x128xf32>
    %30 = arith.truncf %29 : vector<8x128xf32> to vector<8x128xbf16>
    %c0_23 = arith.constant 0 : index
    %c0_24 = arith.constant 0 : index
    %31 = vector.load %arg8[%c0_23, %c0_24] : memref<128x128xbf16, #tpu.memory_space<vmem>>, vector<128x128xbf16>
    %cst_25 = arith.constant dense<0.000000e+00> : vector<8x128xf32>
    %32 = tpu.matmul %30, %31, %cst_25 {dimension_numbers = #tpu.dot_dimension_numbers<[1], [0], [0], [1], [0, 0, 1, 1], [], []>} : vector<8x128xbf16>, vector<128x128xbf16>, vector<8x128xf32> -> vector<8x128xf32>
    %33 = arith.truncf %32 : vector<8x128xf32> to vector<8x128xbf16>
    %cst_26 = arith.constant dense<0.000000e+00> : vector<8x128xf32>
    %34 = tpu.matmul %0, %33, %cst_26 {dimension_numbers = #tpu.dot_dimension_numbers<[1], [0], [0], [1], [0, 0, 1, 1], [], []>} : vector<8x8xbf16>, vector<8x128xbf16>, vector<8x128xf32> -> vector<8x128xf32>
    %c0_27 = arith.constant 0 : index
    %c0_28 = arith.constant 0 : index
    %35 = vector.load %arg9[%c0_27, %c0_28] : memref<1x128xf32, #tpu.memory_space<vmem>>, vector<1x128xf32>
    %36 = vector.broadcast %35 : vector<1x128xf32> to vector<8x128xf32>
    %37 = arith.addf %34, %36 : vector<8x128xf32>
    %c0_29 = arith.constant 0 : index
    %c0_30 = arith.constant 0 : index
    %38 = vector.load %arg10[%c0_29, %c0_30] : memref<8x128xf32, #tpu.memory_space<vmem>>, vector<8x128xf32>
    tpu.vector_store %arg10[%c0_29, %c0_30], %37 {strides = array<i32>} : memref<8x128xf32, #tpu.memory_space<vmem>>, vector<8x128xf32>,
    return
  }
}

</mosaic_0001>

<llo_original>
// kernel: tpu_custom_call.1
$region0: #{tpu_custom_call.1}
  #allocation0 [shape = 'u32[]', space=smem, size = 0x4, offset = 0x4, fixed_abs, tag = 'smem constant byte address 0x4 - core index']
  #allocation1 [shape = 'u32[72,128]{1,0:T(1,128)}', space=vmem, size = 0x9000, scoped, tag = 'internal scratch']
  %s0 = inlined_call_operand.hbm [shape: bf16[8,8], index: 0, kind: input, shape index: {}]
  %s1 = inlined_call_operand.hbm [shape: bf16[8,128], index: 1, kind: input, shape index: {}]
  %s2 = inlined_call_operand.hbm [shape: bf16[128,128], index: 2, kind: input, shape index: {}]
  %s3 = inlined_call_operand.vmem [shape: f32[1,128], index: 3, kind: input, shape index: {}]
  %s4 = inlined_call_operand.hbm [shape: bf16[128,128], index: 4, kind: input, shape index: {}]
  %s5 = inlined_call_operand.vmem [shape: f32[1,128], index: 5, kind: input, shape index: {}]
  %s6 = inlined_call_operand.hbm [shape: bf16[1,128,128], index: 6, kind: input, shape index: {}]
  %s7 = inlined_call_operand.vmem [shape: f32[1,1,128], index: 7, kind: input, shape index: {}]
  %s8 = inlined_call_operand.hbm [shape: bf16[128,128], index: 8, kind: input, shape index: {}]
  %s9 = inlined_call_operand.vmem [shape: f32[1,128], index: 9, kind: input, shape index: {}]
  %s10 = inlined_call_operand.hbm [shape: f32[8,128], index: 10, kind: output, shape index: {}]
  %s11 = sld [smem:[#allocation0]]
  $region74: #{tpu_custom_call.1} parent=0
    _
  %s13 = ssub.s32 1, %s11
  %s14 = scalar_select 0, %s13, %s11
  $region1: #{tpu_custom_call.1} parent=0
    #allocation2 [shape = 'u8[2048]{0}', space=vmem, size = 0x800, scoped, tag = 'input window, operand 0, single buffered']
    #allocation3 [shape = 's32[1]{0}', space=sflag, size = 0x4, scoped, tag = 'scoped memory for tpu_custom_call.1']
    #allocation4 [shape = 's32[1]{0}', space=sflag, size = 0x4, scoped, tag = 'scoped memory for tpu_custom_call.1']
    #allocation5 [shape = 'u8[2048]{0}', space=vmem, size = 0x800, scoped, tag = 'input window, operand 1, single buffered']
    #allocation6 [shape = 's32[1]{0}', space=sflag, size = 0x4, scoped, tag = 'scoped memory for tpu_custom_call.1']
    #allocation7 [shape = 'u8[32768]{0}', space=vmem, size = 0x8000, scoped, tag = 'input window, operand 2, single buffered']
    #allocation8 [shape = 'u8[32768]{0}', space=vmem, size = 0x8000, scoped, tag = 'input window, operand 4, single buffered']
    #allocation9 [shape = 's32[1]{0}', space=sflag, size = 0x4, scoped, tag = 'scoped memory for tpu_custom_call.1']
    #allocation10 [shape = 'u8[32768]{0}', space=vmem, size = 0x8000, scoped, tag = 'input window, operand 6, single buffered']
    #allocation11 [shape = 'u8[32768]{0}', space=vmem, size = 0x8000, scoped, tag = 'input window, operand 8, single buffered']
    #allocation12 [shape = 's32[1]{0}', space=sflag, size = 0x4, scoped, tag = 'scoped memory for tpu_custom_call.1']
    #allocation13 [shape = 'u8[4096]{0}', space=vmem, size = 0x1000, scoped, tag = 'output window, operand 0, single buffered']
    %15 = vsyncpa [#allocation3], 0
    %16 = vsyncpa [#allocation6], 0
    %17 = vsyncpa [#allocation9], 0
    %18 = vsyncpa [#allocation12], 0
    %19 = vsyncpa [#allocation4], 0
    // Predicated region
    $region2: #{tpu_custom_call.1} parent=1 // pred_check
      _
    $region3: #{tpu_custom_call.1} parent=1 // pred_check_branch
      %21 = sbr.rel (0) target = $region5
    $region4: #{tpu_custom_call.1} parent=1 // pred_region
      %23 = vsyncadd [#allocation3], 0
      %s25 = sshll.u32 %s0, 4
      %s26 = int_to_ptr.hbm [resolvable:$true] %s25
      %s27 = sshll.u32 [#allocation2], 4
      %s28 = int_to_ptr.vmem [resolvable:$true] %s27
      %30 = dma.hbm_to_vmem [thread:$0]  %s26, 64, %s28, [#allocation3]
    $region5: #{tpu_custom_call.1} parent=1 // pred_fallthru
      _
    // Predicated region
    $region6: #{tpu_custom_call.1} parent=1 // pred_check
      _
    $region7: #{tpu_custom_call.1} parent=1 // pred_check_branch
      %32 = sbr.rel (0) target = $region9
    $region8: #{tpu_custom_call.1} parent=1 // pred_region
      %34 = vsyncadd [#allocation6], 0
      %s36 = sshll.u32 %s1, 4
      %s37 = int_to_ptr.hbm [resolvable:$true] %s36
      %s38 = sshll.u32 [#allocation5], 4
      %s39 = int_to_ptr.vmem [resolvable:$true] %s38
      %41 = dma.hbm_to_vmem [thread:$0]  %s37, 64, %s39, [#allocation6]
    $region9: #{tpu_custom_call.1} parent=1 // pred_fallthru
      _
    // Predicated region
    $region10: #{tpu_custom_call.1} parent=1 // pred_check
      _
    $region11: #{tpu_custom_call.1} parent=1 // pred_check_branch
      %43 = sbr.rel (0) target = $region13
    $region12: #{tpu_custom_call.1} parent=1 // pred_region
      %45 = vsyncadd [#allocation6], 0
      %s46 = sshll.u32 %s2, 4
      %s47 = int_to_ptr.hbm [resolvable:$true] %s46
      %s48 = sshll.u32 [#allocation7], 4
      %s49 = int_to_ptr.vmem [resolvable:$true] %s48
      %54 = dma.hbm_to_vmem [thread:$0]  %s47, 1024, %s49, [#allocation6], 64, 64, 4
    $region13: #{tpu_custom_call.1} parent=1 // pred_fallthru
      _
    // Predicated region
    $region14: #{tpu_custom_call.1} parent=1 // pred_check
      _
    $region15: #{tpu_custom_call.1} parent=1 // pred_check_branch
      %56 = sbr.rel (0) target = $region17
    $region16: #{tpu_custom_call.1} parent=1 // pred_region
      _
    $region17: #{tpu_custom_call.1} parent=1 // pred_fallthru
      _
    // Predicated region
    $region18: #{tpu_custom_call.1} parent=1 // pred_check
      _
    $region19: #{tpu_custom_call.1} parent=1 // pred_check_branch
      %58 = sbr.rel (0) target = $region21
    $region20: #{tpu_custom_call.1} parent=1 // pred_region
      %60 = vsyncadd [#allocation9], 0
      %s61 = sshll.u32 %s4, 4
      %s62 = int_to_ptr.hbm [resolvable:$true] %s61
      %s63 = sshll.u32 [#allocation8], 4
      %s64 = int_to_ptr.vmem [resolvable:$true] %s63
      %69 = dma.hbm_to_vmem [thread:$0]  %s62, 1024, %s64, [#allocation9], 64, 64, 4
    $region21: #{tpu_custom_call.1} parent=1 // pred_fallthru
      _
    // Predicated region
    $region22: #{tpu_custom_call.1} parent=1 // pred_check
      _
    $region23: #{tpu_custom_call.1} parent=1 // pred_check_branch
      %71 = sbr.rel (0) target = $region25
    $region24: #{tpu_custom_call.1} parent=1 // pred_region
      _
    $region25: #{tpu_custom_call.1} parent=1 // pred_fallthru
      _
    // Predicated region
    $region26: #{tpu_custom_call.1} parent=1 // pred_check
      _
    $region27: #{tpu_custom_call.1} parent=1 // pred_check_branch
      %73 = sbr.rel (0) target = $region29
    $region28: #{tpu_custom_call.1} parent=1 // pred_region
      %75 = vsyncadd [#allocation9], 0
      %s76 = sshll.u32 %s6, 4
      %s77 = int_to_ptr.hbm [resolvable:$true] %s76
      %s78 = sshll.u32 [#allocation10], 4
      %s79 = int_to_ptr.vmem [resolvable:$true] %s78
      %84 = dma.hbm_to_vmem [thread:$0]  %s77, 1024, %s79, [#allocation9], 64, 64, 4
    $region29: #{tpu_custom_call.1} parent=1 // pred_fallthru
      _
    // Predicated region
    $region30: #{tpu_custom_call.1} parent=1 // pred_check
      _
    $region31: #{tpu_custom_call.1} parent=1 // pred_check_branch
      %86 = sbr.rel (0) target = $region33
    $region32: #{tpu_custom_call.1} parent=1 // pred_region
      _
    $region33: #{tpu_custom_call.1} parent=1 // pred_fallthru
      _
    // Predicated region
    $region34: #{tpu_custom_call.1} parent=1 // pred_check
      _
    $region35: #{tpu_custom_call.1} parent=1 // pred_check_branch
      %88 = sbr.rel (0) target = $region37
    $region36: #{tpu_custom_call.1} parent=1 // pred_region
      %90 = vsyncadd [#allocation12], 0
      %s91 = sshll.u32 %s8, 4
      %s92 = int_to_ptr.hbm [resolvable:$true] %s91
      %s93 = sshll.u32 [#allocation11], 4
      %s94 = int_to_ptr.vmem [resolvable:$true] %s93
      %99 = dma.hbm_to_vmem [thread:$0]  %s92, 1024, %s94, [#allocation12], 64, 64, 4
    $region37: #{tpu_custom_call.1} parent=1 // pred_fallthru
      _
    // Predicated region
    $region38: #{tpu_custom_call.1} parent=1 // pred_check
      _
    $region39: #{tpu_custom_call.1} parent=1 // pred_check_branch
      %101 = sbr.rel (0) target = $region41
    $region40: #{tpu_custom_call.1} parent=1 // pred_region
      _
    $region41: #{tpu_custom_call.1} parent=1 // pred_fallthru
      _
    // Predicated region
    $region42: #{tpu_custom_call.1} parent=1 // pred_check
      _
    $region43: #{tpu_custom_call.1} parent=1 // pred_check_branch
      %103 = sbr.rel (0) target = $region45
    $region44: #{tpu_custom_call.1} parent=1 // pred_region
      %105 = dma.done [#allocation3], 64
    $region45: #{tpu_custom_call.1} parent=1 // pred_fallthru
      _
    // Predicated region
    $region46: #{tpu_custom_call.1} parent=1 // pred_check
      _
    $region47: #{tpu_custom_call.1} parent=1 // pred_check_branch
      %107 = sbr.rel (0) target = $region49
    $region48: #{tpu_custom_call.1} parent=1 // pred_region
      %109 = dma.done [#allocation6], 64
    $region49: #{tpu_custom_call.1} parent=1 // pred_fallthru
      _
    // Predicated region
    $region50: #{tpu_custom_call.1} parent=1 // pred_check
      _
    $region51: #{tpu_custom_call.1} parent=1 // pred_check_branch
      %111 = sbr.rel (0) target = $region53
    $region52: #{tpu_custom_call.1} parent=1 // pred_region
      %113 = dma.done [#allocation6], 1024
    $region53: #{tpu_custom_call.1} parent=1 // pred_fallthru
      _
    // Predicated region
    $region54: #{tpu_custom_call.1} parent=1 // pred_check
      _
    $region55: #{tpu_custom_call.1} parent=1 // pred_check_branch
      %115 = sbr.rel (0) target = $region57
    $region56: #{tpu_custom_call.1} parent=1 // pred_region
      %117 = dma.done [#allocation9], 1024
    $region57: #{tpu_custom_call.1} parent=1 // pred_fallthru
      _
    // Predicated region
    $region58: #{tpu_custom_call.1} parent=1 // pred_check
      _
    $region59: #{tpu_custom_call.1} parent=1 // pred_check_branch
      %119 = sbr.rel (0) target = $region61
    $region60: #{tpu_custom_call.1} parent=1 // pred_region
      %121 = dma.done [#allocation9], 1024
    $region61: #{tpu_custom_call.1} parent=1 // pred_fallthru
      _
    // Predicated region
    $region62: #{tpu_custom_call.1} parent=1 // pred_check
      _
    $region63: #{tpu_custom_call.1} parent=1 // pred_check_branch
      %123 = sbr.rel (0) target = $region65
    $region64: #{tpu_custom_call.1} parent=1 // pred_region
      %125 = dma.done [#allocation12], 1024
    $region65: #{tpu_custom_call.1} parent=1 // pred_fallthru
      _
    %v127 = vld [vmem:[#allocation2] sm:$0xf]
    %v128 = vld [vmem:[#allocation5] sm:$0xf]
    %vm129 = vcmask 64512
    %v131 = vsel %vm129, %v127, 0
    %vm133 = vcmask 1043456
    %v135 = vsel %vm133, %v128, 0
    %137 = vmatpush.bf16.msra.mxu0 0
    %138 = vmatpush.bf16.msra.mxu0 0
    %139 = vmatpush.bf16.msra.mxu0 0
    %140 = vmatpush.bf16.msra.mxu0 0
    %141 = vmatpush.bf16.msra.mxu0 0
    %142 = vmatpush.bf16.msra.mxu0 0
    %143 = vmatpush.bf16.msra.mxu0 0
    %144 = vmatpush.bf16.msra.mxu0 %v135
    %145 = vmatmul.bf16.gmra.mxu0 %v131
    %v146 = vpop.f32.mrf.mxu0
    %v147 = vadd.f32 0.0, %v146
    %v148 = vpop.f32.mrf.mxu0
    %149 = vdwg.mxu0
    %v150 = vpack.c.bf16 %v147, %v147
    %v151 = vld [vmem:[#allocation7] sm:$0xf]
    %v152 = vld [vmem:[#allocation7 + $0x4] sm:$0xf]
    %v153 = vld [vmem:[#allocation7 + $0x8] sm:$0xf]
    %v154 = vld [vmem:[#allocation7 + $0xc] sm:$0xf]
    %v155 = vld [vmem:[#allocation7 + $0x10] sm:$0xf]
    %v156 = vld [vmem:[#allocation7 + $0x14] sm:$0xf]
    %v157 = vld [vmem:[#allocation7 + $0x18] sm:$0xf]
    %v158 = vld [vmem:[#allocation7 + $0x1c] sm:$0xf]
    %v159 = vld [vmem:[#allocation7 + $0x20] sm:$0xf]
    %v160 = vld [vmem:[#allocation7 + $0x24] sm:$0xf]
    %v161 = vld [vmem:[#allocation7 + $0x28] sm:$0xf]
    %v162 = vld [vmem:[#allocation7 + $0x2c] sm:$0xf]
    %v163 = vld [vmem:[#allocation7 + $0x30] sm:$0xf]
    %v164 = vld [vmem:[#allocation7 + $0x34] sm:$0xf]
    %v165 = vld [vmem:[#allocation7 + $0x38] sm:$0xf]
    %v166 = vld [vmem:[#allocation7 + $0x3c] sm:$0xf]
    %v167 = vld [vmem:[%s3] sm:$0x1]
    %v169 = vperm.slane %v167, 0
    %v187 = vunpack.c.l.b16 %v151
    %v188 = vunpack.c.l.b16 %v152
    %v189 = vunpack.c.l.b16 %v153
    %v190 = vunpack.c.l.b16 %v154
    %v191 = vunpack.c.l.b16 %v155
    %v192 = vunpack.c.l.b16 %v156
    %v193 = vunpack.c.l.b16 %v157
    %v194 = vunpack.c.l.b16 %v158
    %v195 = vunpack.c.l.b16 %v159
    %v196 = vunpack.c.l.b16 %v160
    %v197 = vunpack.c.l.b16 %v161
    %v198 = vunpack.c.l.b16 %v162
    %v199 = vunpack.c.l.b16 %v163
    %v200 = vunpack.c.l.b16 %v164
    %v201 = vunpack.c.l.b16 %v165
    %v202 = vunpack.c.l.b16 %v166
    %v203 = vpack.c.b16 %v188, %v187
    %v204 = vpack.c.b16 %v190, %v189
    %v205 = vpack.c.b16 %v192, %v191
    %v206 = vpack.c.b16 %v194, %v193
    %v207 = vpack.c.b16 %v196, %v195
    %v208 = vpack.c.b16 %v198, %v197
    %v209 = vpack.c.b16 %v200, %v199
    %v210 = vpack.c.b16 %v202, %v201
    %219 = vmatpush.bf16.msra.mxu0 %v210
    %220 = vmatpush.bf16.msra.mxu0 %v209
    %221 = vmatpush.bf16.msra.mxu0 %v208
    %222 = vmatpush.bf16.msra.mxu0 %v207
    %223 = vmatpush.bf16.msra.mxu0 %v206
    %224 = vmatpush.bf16.msra.mxu0 %v205
    %225 = vmatpush.bf16.msra.mxu0 %v204
    %226 = vmatpush.bf16.msra.mxu0 %v203
    %227 = vmatmul.bf16.gmra.mxu0 %v150
    %v228 = vpop.f32.mrf.mxu0
    %v229 = vadd.f32 %v169, %v228
    %v230 = vpop.f32.mrf.mxu0
    %231 = vdwg.mxu0
    %v232 = vmax.f32 %v229, 0.0
    %v233 = vld [vmem:[#allocation8] sm:$0xf]
    %v234 = vld [vmem:[#allocation8 + $0x4] sm:$0xf]
    %v235 = vld [vmem:[#allocation8 + $0x8] sm:$0xf]
    %v236 = vld [vmem:[#allocation8 + $0xc] sm:$0xf]
    %v237 = vld [vmem:[#allocation8 + $0x10] sm:$0xf]
    %v238 = vld [vmem:[#allocation8 + $0x14] sm:$0xf]
    %v239 = vld [vmem:[#allocation8 + $0x18] sm:$0xf]
    %v240 = vld [vmem:[#allocation8 + $0x1c] sm:$0xf]
    %v241 = vld [vmem:[#allocation8 + $0x20] sm:$0xf]
    %v242 = vld [vmem:[#allocation8 + $0x24] sm:$0xf]
    %v243 = vld [vmem:[#allocation8 + $0x28] sm:$0xf]
    %v244 = vld [vmem:[#allocation8 + $0x2c] sm:$0xf]
    %v245 = vld [vmem:[#allocation8 + $0x30] sm:$0xf]
    %v246 = vld [vmem:[#allocation8 + $0x34] sm:$0xf]
    %v247 = vld [vmem:[#allocation8 + $0x38] sm:$0xf]
    %v248 = vld [vmem:[#allocation8 + $0x3c] sm:$0xf]
    %v249 = vld [vmem:[%s5] sm:$0x1]
    %v251 = vperm.slane %v249, 0
    %v269 = vunpack.c.l.b16 %v233
    %v270 = vunpack.c.l.b16 %v234
    %v271 = vunpack.c.l.b16 %v235
    %v272 = vunpack.c.l.b16 %v236
    %v273 = vunpack.c.l.b16 %v237
    %v274 = vunpack.c.l.b16 %v238
    %v275 = vunpack.c.l.b16 %v239
    %v276 = vunpack.c.l.b16 %v240
    %v277 = vunpack.c.l.b16 %v241
    %v278 = vunpack.c.l.b16 %v242
    %v279 = vunpack.c.l.b16 %v243
    %v280 = vunpack.c.l.b16 %v244
    %v281 = vunpack.c.l.b16 %v245
    %v282 = vunpack.c.l.b16 %v246
    %v283 = vunpack.c.l.b16 %v247
    %v284 = vunpack.c.l.b16 %v248
    %v285 = vpack.c.b16 %v270, %v269
    %v286 = vpack.c.b16 %v272, %v271
    %v287 = vpack.c.b16 %v274, %v273
    %v288 = vpack.c.b16 %v276, %v275
    %v289 = vpack.c.b16 %v278, %v277
    %v290 = vpack.c.b16 %v280, %v279
    %v291 = vpack.c.b16 %v282, %v281
    %v292 = vpack.c.b16 %v284, %v283
    %301 = vmatpush.bf16.msra.mxu0 %v292
    %302 = vmatpush.bf16.msra.mxu0 %v291
    %303 = vmatpush.bf16.msra.mxu0 %v290
    %304 = vmatpush.bf16.msra.mxu0 %v289
    %305 = vmatpush.bf16.msra.mxu0 %v288
    %306 = vmatpush.bf16.msra.mxu0 %v287
    %307 = vmatpush.bf16.msra.mxu0 %v286
    %308 = vmatpush.bf16.msra.mxu0 %v285
    %309 = vmatmul.bf16.gmra.mxu0 %v128
    %v310 = vpop.f32.mrf.mxu0
    %v311 = vadd.f32 %v251, %v310
    %v312 = vpop.f32.mrf.mxu0
    %313 = vdwg.mxu0
    %v314 = vadd.f32 %v232, %v311
    %v315 = vpack.c.bf16 %v314, %v314
    %v316 = vld [vmem:[#allocation10] sm:$0xf]
    %v317 = vld [vmem:[#allocation10 + $0x4] sm:$0xf]
    %v318 = vld [vmem:[#allocation10 + $0x8] sm:$0xf]
    %v319 = vld [vmem:[#allocation10 + $0xc] sm:$0xf]
    %v320 = vld [vmem:[#allocation10 + $0x10] sm:$0xf]
    %v321 = vld [vmem:[#allocation10 + $0x14] sm:$0xf]
    %v322 = vld [vmem:[#allocation10 + $0x18] sm:$0xf]
    %v323 = vld [vmem:[#allocation10 + $0x1c] sm:$0xf]
    %v324 = vld [vmem:[#allocation10 + $0x20] sm:$0xf]
    %v325 = vld [vmem:[#allocation10 + $0x24] sm:$0xf]
    %v326 = vld [vmem:[#allocation10 + $0x28] sm:$0xf]
    %v327 = vld [vmem:[#allocation10 + $0x2c] sm:$0xf]
    %v328 = vld [vmem:[#allocation10 + $0x30] sm:$0xf]
    %v329 = vld [vmem:[#allocation10 + $0x34] sm:$0xf]
    %v330 = vld [vmem:[#allocation10 + $0x38] sm:$0xf]
    %v331 = vld [vmem:[#allocation10 + $0x3c] sm:$0xf]
    %v348 = vunpack.c.l.b16 %v316
    %v349 = vunpack.c.l.b16 %v317
    %v350 = vunpack.c.l.b16 %v318
    %v351 = vunpack.c.l.b16 %v319
    %v352 = vunpack.c.l.b16 %v320
    %v353 = vunpack.c.l.b16 %v321
    %v354 = vunpack.c.l.b16 %v322
    %v355 = vunpack.c.l.b16 %v323
    %v356 = vunpack.c.l.b16 %v324
    %v357 = vunpack.c.l.b16 %v325
    %v358 = vunpack.c.l.b16 %v326
    %v359 = vunpack.c.l.b16 %v327
    %v360 = vunpack.c.l.b16 %v328
    %v361 = vunpack.c.l.b16 %v329
    %v362 = vunpack.c.l.b16 %v330
    %v363 = vunpack.c.l.b16 %v331
    %v364 = vpack.c.b16 %v349, %v348
    %v365 = vpack.c.b16 %v351, %v350
    %v366 = vpack.c.b16 %v353, %v352
    %v367 = vpack.c.b16 %v355, %v354
    %v368 = vpack.c.b16 %v357, %v356
    %v369 = vpack.c.b16 %v359, %v358
    %v370 = vpack.c.b16 %v361, %v360
    %v371 = vpack.c.b16 %v363, %v362
    %380 = vmatpush.bf16.msra.mxu0 %v371
    %381 = vmatpush.bf16.msra.mxu0 %v370
    %382 = vmatpush.bf16.msra.mxu0 %v369
    %383 = vmatpush.bf16.msra.mxu0 %v368
    %384 = vmatpush.bf16.msra.mxu0 %v367
    %385 = vmatpush.bf16.msra.mxu0 %v366
    %386 = vmatpush.bf16.msra.mxu0 %v365
    %387 = vmatpush.bf16.msra.mxu0 %v364
    %388 = vmatmul.bf16.gmra.mxu0 %v315
    %v389 = vpop.f32.mrf.mxu0
    %v390 = vadd.f32 0.0, %v389
    %v391 = vpop.f32.mrf.mxu0
    %392 = vdwg.mxu0
    %v393 = vpack.c.bf16 %v390, %v390
    %v394 = vld [vmem:[%s7] sm:$0x1]
    %v396 = vperm.slane %v394, 0
    %v399 = vsel %vm133, %v393, 0
    %401 = vmatpush.bf16.msra.mxu0 0
    %402 = vmatpush.bf16.msra.mxu0 0
    %403 = vmatpush.bf16.msra.mxu0 0
    %404 = vmatpush.bf16.msra.mxu0 0
    %405 = vmatpush.bf16.msra.mxu0 0
    %406 = vmatpush.bf16.msra.mxu0 0
    %407 = vmatpush.bf16.msra.mxu0 0
    %408 = vmatpush.bf16.msra.mxu0 %v399
    %409 = vmatmul.bf16.gmra.mxu0 %v131
    %v410 = vpop.f32.mrf.mxu0
    %v411 = vadd.f32 %v396, %v410
    %v412 = vpop.f32.mrf.mxu0
    %413 = vdwg.mxu0
    %v414 = vmax.f32 %v411, 0.0
    %v415 = vadd.f32 %v414, %v314
    %v416 = vpack.c.bf16 %v415, %v415
    %v417 = vld [vmem:[#allocation11] sm:$0xf]
    %v418 = vld [vmem:[#allocation11 + $0x4] sm:$0xf]
    %v419 = vld [vmem:[#allocation11 + $0x8] sm:$0xf]
    %v420 = vld [vmem:[#allocation11 + $0xc] sm:$0xf]
    %v421 = vld [vmem:[#allocation11 + $0x10] sm:$0xf]
    %v422 = vld [vmem:[#allocation11 + $0x14] sm:$0xf]
    %v423 = vld [vmem:[#allocation11 + $0x18] sm:$0xf]
    %v424 = vld [vmem:[#allocation11 + $0x1c] sm:$0xf]
    %v425 = vld [vmem:[#allocation11 + $0x20] sm:$0xf]
    %v426 = vld [vmem:[#allocation11 + $0x24] sm:$0xf]
    %v427 = vld [vmem:[#allocation11 + $0x28] sm:$0xf]
    %v428 = vld [vmem:[#allocation11 + $0x2c] sm:$0xf]
    %v429 = vld [vmem:[#allocation11 + $0x30] sm:$0xf]
    %v430 = vld [vmem:[#allocation11 + $0x34] sm:$0xf]
    %v431 = vld [vmem:[#allocation11 + $0x38] sm:$0xf]
    %v432 = vld [vmem:[#allocation11 + $0x3c] sm:$0xf]
    %v449 = vunpack.c.l.b16 %v417
    %v450 = vunpack.c.l.b16 %v418
    %v451 = vunpack.c.l.b16 %v419
    %v452 = vunpack.c.l.b16 %v420
    %v453 = vunpack.c.l.b16 %v421
    %v454 = vunpack.c.l.b16 %v422
    %v455 = vunpack.c.l.b16 %v423
    %v456 = vunpack.c.l.b16 %v424
    %v457 = vunpack.c.l.b16 %v425
    %v458 = vunpack.c.l.b16 %v426
    %v459 = vunpack.c.l.b16 %v427
    %v460 = vunpack.c.l.b16 %v428
    %v461 = vunpack.c.l.b16 %v429
    %v462 = vunpack.c.l.b16 %v430
    %v463 = vunpack.c.l.b16 %v431
    %v464 = vunpack.c.l.b16 %v432
    %v465 = vpack.c.b16 %v450, %v449
    %v466 = vpack.c.b16 %v452, %v451
    %v467 = vpack.c.b16 %v454, %v453
    %v468 = vpack.c.b16 %v456, %v455
    %v469 = vpack.c.b16 %v458, %v457
    %v470 = vpack.c.b16 %v460, %v459
    %v471 = vpack.c.b16 %v462, %v461
    %v472 = vpack.c.b16 %v464, %v463
    %481 = vmatpush.bf16.msra.mxu0 %v472
    %482 = vmatpush.bf16.msra.mxu0 %v471
    %483 = vmatpush.bf16.msra.mxu0 %v470
    %484 = vmatpush.bf16.msra.mxu0 %v469
    %485 = vmatpush.bf16.msra.mxu0 %v468
    %486 = vmatpush.bf16.msra.mxu0 %v467
    %487 = vmatpush.bf16.msra.mxu0 %v466
    %488 = vmatpush.bf16.msra.mxu0 %v465
    %489 = vmatmul.bf16.gmra.mxu0 %v416
    %v490 = vpop.f32.mrf.mxu0
    %v491 = vadd.f32 0.0, %v490
    %v492 = vpop.f32.mrf.mxu0
    %493 = vdwg.mxu0
    %v494 = vpack.c.bf16 %v491, %v491
    %v495 = vld [vmem:[%s9] sm:$0x1]
    %v497 = vperm.slane %v495, 0
    %v500 = vsel %vm133, %v494, 0
    %502 = vmatpush.bf16.msra.mxu0 0
    %503 = vmatpush.bf16.msra.mxu0 0
    %504 = vmatpush.bf16.msra.mxu0 0
    %505 = vmatpush.bf16.msra.mxu0 0
    %506 = vmatpush.bf16.msra.mxu0 0
    %507 = vmatpush.bf16.msra.mxu0 0
    %508 = vmatpush.bf16.msra.mxu0 0
    %509 = vmatpush.bf16.msra.mxu0 %v500
    %510 = vmatmul.bf16.gmra.mxu0 %v131
    %v511 = vpop.f32.mrf.mxu0
    %v512 = vadd.f32 %v497, %v511
    %v513 = vpop.f32.mrf.mxu0
    %514 = vdwg.mxu0
    %515 = vst [vmem:[#allocation13] sm:$0xff] %v512
    // Predicated region
    $region66: #{tpu_custom_call.1} parent=1 // pred_check
      _
    $region67: #{tpu_custom_call.1} parent=1 // pred_check_branch
      %517 = sbr.rel (0) target = $region69
    $region68: #{tpu_custom_call.1} parent=1 // pred_region
      %519 = vsyncadd [#allocation4], 0
      %s521 = sshll.u32 [#allocation13], 4
      %s522 = int_to_ptr.vmem [resolvable:$true] %s521
      %s523 = sshll.u32 %s10, 4
      %s524 = int_to_ptr.hbm [resolvable:$true] %s523
      %526 = dma.vmem_to_hbm [thread:$0]  %s522, 128, %s524, [#allocation4]
    $region69: #{tpu_custom_call.1} parent=1 // pred_fallthru
      _
    // Predicated region
    $region70: #{tpu_custom_call.1} parent=1 // pred_check
      _
    $region71: #{tpu_custom_call.1} parent=1 // pred_check_branch
      %528 = sbr.rel (0) target = $region73
    $region72: #{tpu_custom_call.1} parent=1 // pred_region
      %530 = dma.done [#allocation4], 128
    $region73: #{tpu_custom_call.1} parent=1 // pred_fallthru
      _
    %531 = vsyncpa [#allocation3], 1
    %532 = vsyncpa [#allocation6], 1
    %533 = vsyncpa [#allocation9], 1
    %534 = vsyncpa [#allocation12], 1
    %535 = vsyncpa [#allocation4], 1

</llo_original>
